<compile_context>
chip_gen: v5e
topology: v5e:2x2
jax: 0.10.0
libtpu: 0.0.40
codegen_flags: <defaults>
</compile_context>

<pallas_src>
import jax
import jax.numpy as jnp
import numpy as np
from jax.experimental import pallas as pl
from jax.experimental.pallas import tpu as pltpu

# ---- model config (small, deterministic) ----
B = 2          # batch
N = 8          # sequence length
DIM = 32       # hidden dim
HEADS = 4
KV_HEADS = 2
HEAD_DIM = DIM // HEADS          # 8
KV_GROUPS = HEADS // KV_HEADS    # 2
MLP_DIM = 64
SCALE = HEAD_DIM ** (-0.5)
EPS = 1e-6

BN = B * N                       # 16
Q_OUT = HEADS * HEAD_DIM         # 32
KV_OUT = KV_HEADS * HEAD_DIM     # 16
PAD = 128                        # lane-dense width for fused QKV / packed vectors
GU_OUT = 2 * MLP_DIM             # 128 (exactly lane-dense)


def encoder_layer_kernel(
    x_ref,      # (BN, DIM)    f32
    vecs_ref,   # (4, PAD)     f32  [bqkv_padded ; n1 ; n2 ; ob] (rows, zero padded)
    wqkv_ref,   # (DIM, PAD)   bf16 [Q*scale | K group-expanded | V group-expanded | 0]
    ow_ref,     # (Q_OUT, DIM) bf16 o_proj weight
    wgu_ref,    # (DIM, GU_OUT) bf16 [gate | up]
    dw_ref,     # (MLP_DIM, DIM) bf16 down_proj
    o_ref,      # (BN, DIM)    f32
):
    x = x_ref[...]                                    # (16, 32)

    bqkv = vecs_ref[0:1, :]                           # (1, 128)
    n1 = vecs_ref[1:2, 0:DIM]                         # (1, 32)
    n2 = vecs_ref[2:3, 0:DIM]
    ob = vecs_ref[3:4, 0:DIM]

    # ---- RMSNorm (input) ----
    var = jnp.mean(x * x, axis=-1, keepdims=True)
    xn = x * jax.lax.rsqrt(var + EPS) * n1            # sublane broadcast of (1, 32)

    # ---- fused QKV projection: one lane-dense (16,128) matmul, bf16 operands, f32 acc ----
    qkv = jnp.dot(xn.astype(jnp.bfloat16), wqkv_ref[...],
                  preferred_element_type=jnp.float32) + bqkv      # (16, 128)

    # ---- batched GQA attention (heads stacked on a leading axis, no rank-4 transposes) ----
    def head_slab(base, h):
        # (BN, HEAD_DIM) -> (B, N, HEAD_DIM); leading-dim split only (no lane relayout)
        return qkv[:, base + h * HEAD_DIM: base + (h + 1) * HEAD_DIM].reshape(B, N, HEAD_DIM)

    q_h = jnp.concatenate([head_slab(0, h) for h in range(HEADS)], axis=0)          # (H*B, N, D)
    k_h = jnp.concatenate([head_slab(Q_OUT, h) for h in range(HEADS)], axis=0)      # group-expanded
    v_h = jnp.concatenate([head_slab(2 * Q_OUT, h) for h in range(HEADS)], axis=0)

    # scores (scale already folded into Q weights/bias) and softmax
    s = jnp.einsum('hnd,hmd->hnm', q_h, k_h,
                   preferred_element_type=jnp.float32)            # (H*B, N, N)
    s = s - jnp.max(s, axis=-1, keepdims=True)
    p = jnp.exp(s)
    p = p * pl.reciprocal(jnp.sum(p, axis=-1, keepdims=True), approx=True)
    o_h = jnp.einsum('hnm,hmd->hnd', p, v_h,
                     preferred_element_type=jnp.float32)          # (H*B, N, D)

    # reassemble (BN, Q_OUT) rows (head-major columns), single o_proj matmul
    attn_rows = jnp.concatenate(
        [o_h[h * B:(h + 1) * B].reshape(BN, HEAD_DIM) for h in range(HEADS)], axis=-1)
    attn = jnp.dot(attn_rows.astype(jnp.bfloat16), ow_ref[...],
                   preferred_element_type=jnp.float32) + ob       # (16, 32)

    # ---- residual 1 ----
    x1 = x + attn

    # ---- RMSNorm (output) ----
    var2 = jnp.mean(x1 * x1, axis=-1, keepdims=True)
    xn2 = x1 * jax.lax.rsqrt(var2 + EPS) * n2

    # ---- SiLU MLP: fused gate+up (128-lane output), then down projection ----
    gu = jnp.dot(xn2.astype(jnp.bfloat16), wgu_ref[...],
                 preferred_element_type=jnp.float32)              # (16, 128)
    gate = gu[:, :MLP_DIM]
    up = gu[:, MLP_DIM:]
    # sigmoid via tanh: numerically saturating for large |gate|, runs on the EUP slot
    sig = 0.5 * jnp.tanh(0.5 * gate) + 0.5
    hidden = gate * sig * up
    down = jnp.dot(hidden.astype(jnp.bfloat16), dw_ref[...],
                   preferred_element_type=jnp.float32)            # (16, 32)

    # ---- residual 2 ----
    o_ref[...] = x1 + down


# ---- static cost estimate (advisory for XLA scheduling) ----
_FLOPS = (2 * BN * DIM * (3 * Q_OUT)            # fused QKV (group-expanded)
          + 2 * (HEADS * B) * N * N * HEAD_DIM * 2   # scores + p@v
          + 2 * BN * Q_OUT * DIM                # o_proj
          + 2 * BN * DIM * GU_OUT               # gate + up
          + 2 * BN * MLP_DIM * DIM)             # down
_TRANSCENDENTALS = (HEADS * B) * N * N + BN * MLP_DIM + 2 * BN + (HEADS * B) * N
_BYTES = (2 * BN * DIM * 4                      # x in + out
          + 4 * PAD * 4                         # packed vectors
          + (DIM * PAD + Q_OUT * DIM + DIM * GU_OUT + MLP_DIM * DIM) * 2)  # bf16 weights


def prepare_params(params):
    """One-time wrapper-side folding:
       - fold SCALE into Q weight/bias
       - group-expand K/V columns per head (GQA repeat_kv done in the weights)
       - fuse QKV into one lane-dense (DIM, 128) bf16 slab, gate/up into (DIM, 128)
       - pack the tiny f32 vector operands into one (4, 128) array (single DMA)."""
    (n1, qw, qb, kw, kb, vw, vb, ow, ob, n2, gw, uw, dw) = params

    kv_map = [h // KV_GROUPS for h in range(HEADS)]   # head -> kv head, e.g. [0,0,1,1]
    kw_rep = jnp.concatenate([kw[:, g * HEAD_DIM:(g + 1) * HEAD_DIM] for g in kv_map], axis=1)
    vw_rep = jnp.concatenate([vw[:, g * HEAD_DIM:(g + 1) * HEAD_DIM] for g in kv_map], axis=1)
    kb_rep = jnp.concatenate([kb[:, g * HEAD_DIM:(g + 1) * HEAD_DIM] for g in kv_map], axis=1)
    vb_rep = jnp.concatenate([vb[:, g * HEAD_DIM:(g + 1) * HEAD_DIM] for g in kv_map], axis=1)

    wqkv = jnp.zeros((DIM, PAD), jnp.float32)
    wqkv = wqkv.at[:, 0:Q_OUT].set(qw * SCALE)
    wqkv = wqkv.at[:, Q_OUT:2 * Q_OUT].set(kw_rep)
    wqkv = wqkv.at[:, 2 * Q_OUT:3 * Q_OUT].set(vw_rep)

    bqkv = jnp.zeros((PAD,), jnp.float32)
    bqkv = bqkv.at[0:Q_OUT].set(qb[0] * SCALE)
    bqkv = bqkv.at[Q_OUT:2 * Q_OUT].set(kb_rep[0])
    bqkv = bqkv.at[2 * Q_OUT:3 * Q_OUT].set(vb_rep[0])

    vecs = jnp.zeros((4, PAD), jnp.float32)
    vecs = vecs.at[0, :].set(bqkv)
    vecs = vecs.at[1, 0:DIM].set(n1[0])
    vecs = vecs.at[2, 0:DIM].set(n2[0])
    vecs = vecs.at[3, 0:DIM].set(ob[0])

    wgu = jnp.concatenate([gw, uw], axis=1)

    return (vecs,
            wqkv.astype(jnp.bfloat16),
            ow.astype(jnp.bfloat16),
            wgu.astype(jnp.bfloat16),
            dw.astype(jnp.bfloat16))


@jax.jit
def encoder_layer(x, prepped):
    (vecs, wqkv, ow, wgu, dw) = prepped
    x2d = x.reshape(BN, DIM)                       # flatten (B, N) -> rows (layout plumbing)
    vmem = pl.BlockSpec(memory_space=pltpu.MemorySpace.VMEM)
    out2d = pl.pallas_call(
        encoder_layer_kernel,
        out_shape=jax.ShapeDtypeStruct((BN, DIM), jnp.float32),
        in_specs=[vmem] * 6,
        out_specs=vmem,
        cost_estimate=pl.CostEstimate(flops=_FLOPS,
                                      transcendentals=_TRANSCENDENTALS,
                                      bytes_accessed=_BYTES),
    )(x2d, vecs, wqkv, ow, wgu, dw)
    return out2d.reshape(B, N, DIM)


def reference(x, params):
    """Pure-JAX f32 reference matching the PyTorch module semantics."""
    (n1, qw, qb, kw, kb, vw, vb, ow, ob, n2, gw, uw, dw) = params

    def rms(x, w):
        var = jnp.mean(x * x, axis=-1, keepdims=True)
        return x * jax.lax.rsqrt(var + EPS) * w[0]

    xn = rms(x, n1)
    q = xn @ qw + qb[0]
    k = xn @ kw + kb[0]
    v = xn @ vw + vb[0]
    q = q.reshape(B, N, HEADS, HEAD_DIM).transpose(0, 2, 1, 3)
    k = k.reshape(B, N, KV_HEADS, HEAD_DIM).transpose(0, 2, 1, 3)
    v = v.reshape(B, N, KV_HEADS, HEAD_DIM).transpose(0, 2, 1, 3)
    k = jnp.repeat(k, KV_GROUPS, axis=1)
    v = jnp.repeat(v, KV_GROUPS, axis=1)
    s = jnp.einsum('bhnd,bhmd->bhnm', q, k) * SCALE
    p = jax.nn.softmax(s, axis=-1)
    a = jnp.einsum('bhnm,bhmd->bhnd', p, v)
    a = a.transpose(0, 2, 1, 3).reshape(B, N, HEADS * HEAD_DIM)
    attn = a @ ow + ob[0]
    x1 = x + attn
    xn2 = rms(x1, n2)
    g = xn2 @ gw
    u = xn2 @ uw
    down = (jax.nn.silu(g) * u) @ dw
    return x1 + down


def init_params(key):
    ks = jax.random.split(key, 8)
    s = 0.05
    n1 = jnp.ones((1, DIM), jnp.float32)
    n2 = jnp.ones((1, DIM), jnp.float32)
    qw = jax.random.normal(ks[0], (DIM, HEADS * HEAD_DIM), jnp.float32) * s
    kw = jax.random.normal(ks[1], (DIM, KV_HEADS * HEAD_DIM), jnp.float32) * s
    vw = jax.random.normal(ks[2], (DIM, KV_HEADS * HEAD_DIM), jnp.float32) * s
    ow = jax.random.normal(ks[3], (HEADS * HEAD_DIM, DIM), jnp.float32) * s
    qb = jax.random.normal(ks[4], (1, HEADS * HEAD_DIM), jnp.float32) * s
    kb = jax.random.normal(ks[5], (1, KV_HEADS * HEAD_DIM), jnp.float32) * s
    vb = jax.random.normal(ks[6], (1, KV_HEADS * HEAD_DIM), jnp.float32) * s
    ob = jax.random.normal(ks[7], (1, DIM), jnp.float32) * s
    ks2 = jax.random.split(jax.random.fold_in(key, 1), 3)
    gw = jax.random.normal(ks2[0], (DIM, MLP_DIM), jnp.float32) * s
    uw = jax.random.normal(ks2[1], (DIM, MLP_DIM), jnp.float32) * s
    dw = jax.random.normal(ks2[2], (MLP_DIM, DIM), jnp.float32) * s
    return (n1, qw, qb, kw, kb, vw, vb, ow, ob, n2, gw, uw, dw)


if __name__ == "__main__":
    key = jax.random.PRNGKey(0)
    kx, kp = jax.random.split(key)
    x = jax.random.normal(kx, (B, N, DIM), jnp.float32)
    params = init_params(kp)
    prepped = prepare_params(params)

    out = encoder_layer(x, prepped)
    out = jax.block_until_ready(out)

    ref = reference(x, params)
    np.testing.assert_allclose(np.asarray(out), np.asarray(ref), rtol=1e-2, atol=1e-2)

    print("KERNEL_OK")
</pallas_src>

<mosaic_0001>
module attributes {stable_mosaic.version = 11 : i64} {
  func.func @encoder_layer_kernel(%arg0: memref<16x32xf32, #tpu.memory_space<vmem>>, %arg1: memref<4x128xf32, #tpu.memory_space<vmem>>, %arg2: memref<32x128xbf16, #tpu.memory_space<vmem>>, %arg3: memref<32x32xbf16, #tpu.memory_space<vmem>>, %arg4: memref<32x128xbf16, #tpu.memory_space<vmem>>, %arg5: memref<64x32xbf16, #tpu.memory_space<vmem>>, %arg6: memref<16x32xf32, #tpu.memory_space<vmem>>) attributes {dimension_semantics = [], scalar_prefetch = 0 : i64, scratch_operands = 0 : i64, tpu.core_type = #tpu.core_type<tc>} {
    %c0 = arith.constant 0 : index
    %c0_0 = arith.constant 0 : index
    %0 = vector.load %arg0[%c0, %c0_0] : memref<16x32xf32, #tpu.memory_space<vmem>>, vector<16x32xf32>
    %c0_1 = arith.constant 0 : index
    %c0_2 = arith.constant 0 : index
    %1 = vector.load %arg1[%c0_1, %c0_2] : memref<4x128xf32, #tpu.memory_space<vmem>>, vector<1x128xf32>
    %c1 = arith.constant 1 : index
    %c0_3 = arith.constant 0 : index
    %2 = vector.load %arg1[%c1, %c0_3] : memref<4x128xf32, #tpu.memory_space<vmem>>, vector<1x32xf32>
    %c2 = arith.constant 2 : index
    %c0_4 = arith.constant 0 : index
    %3 = vector.load %arg1[%c2, %c0_4] : memref<4x128xf32, #tpu.memory_space<vmem>>, vector<1x32xf32>
    %c3 = arith.constant 3 : index
    %c0_5 = arith.constant 0 : index
    %4 = vector.load %arg1[%c3, %c0_5] : memref<4x128xf32, #tpu.memory_space<vmem>>, vector<1x32xf32>
    %5 = arith.mulf %0, %0 : vector<16x32xf32>
    %cst = arith.constant dense<0.000000e+00> : vector<16xf32>
    %6 = vector.multi_reduction <add>, %5, %cst [1] : vector<16x32xf32> to vector<16xf32>
    %7 = vector.shape_cast %6 : vector<16xf32> to vector<16x1xf32>
    %cst_6 = arith.constant 3.200000e+01 : f32
    %8 = vector.broadcast %cst_6 : f32 to vector<16x1xf32>
    %9 = arith.divf %7, %8 : vector<16x1xf32>
    %cst_7 = arith.constant 9.99999997E-7 : f32
    %10 = vector.broadcast %cst_7 : f32 to vector<16x1xf32>
    %11 = arith.addf %9, %10 : vector<16x1xf32>
    %12 = math.rsqrt %11 : vector<16x1xf32>
    %13 = vector.broadcast %12 : vector<16x1xf32> to vector<16x32xf32>
    %14 = arith.mulf %0, %13 : vector<16x32xf32>
    %15 = vector.broadcast %2 : vector<1x32xf32> to vector<16x32xf32>
    %16 = arith.mulf %14, %15 : vector<16x32xf32>
    %17 = arith.truncf %16 : vector<16x32xf32> to vector<16x32xbf16>
    %c0_8 = arith.constant 0 : index
    %c0_9 = arith.constant 0 : index
    %18 = vector.load %arg2[%c0_8, %c0_9] : memref<32x128xbf16, #tpu.memory_space<vmem>>, vector<32x128xbf16>
    %cst_10 = arith.constant dense<0.000000e+00> : vector<16x128xf32>
    %19 = tpu.matmul %17, %18, %cst_10 {dimension_numbers = #tpu.dot_dimension_numbers<[1], [0], [0], [1], [0, 0, 1, 1], [], []>} : vector<16x32xbf16>, vector<32x128xbf16>, vector<16x128xf32> -> vector<16x128xf32>
    %20 = vector.broadcast %1 : vector<1x128xf32> to vector<16x128xf32>
    %21 = arith.addf %19, %20 : vector<16x128xf32>
    %22 = vector.extract_strided_slice %21 {offsets = [0, 0], sizes = [16, 8], strides = [1, 1]} : vector<16x128xf32> to vector<16x8xf32>
    %23 = vector.shape_cast %22 : vector<16x8xf32> to vector<2x8x8xf32>
    %24 = vector.extract_strided_slice %21 {offsets = [0, 8], sizes = [16, 8], strides = [1, 1]} : vector<16x128xf32> to vector<16x8xf32>
    %25 = vector.shape_cast %24 : vector<16x8xf32> to vector<2x8x8xf32>
    %26 = vector.extract_strided_slice %21 {offsets = [0, 16], sizes = [16, 8], strides = [1, 1]} : vector<16x128xf32> to vector<16x8xf32>
    %27 = vector.shape_cast %26 : vector<16x8xf32> to vector<2x8x8xf32>
    %28 = vector.extract_strided_slice %21 {offsets = [0, 24], sizes = [16, 8], strides = [1, 1]} : vector<16x128xf32> to vector<16x8xf32>
    %29 = vector.shape_cast %28 : vector<16x8xf32> to vector<2x8x8xf32>
    %30 = tpu.concatenate %23, %25, %27, %29 in 0 : vector<2x8x8xf32>, vector<2x8x8xf32>, vector<2x8x8xf32>, vector<2x8x8xf32> -> vector<8x8x8xf32>
    %31 = vector.extract_strided_slice %21 {offsets = [0, 32], sizes = [16, 8], strides = [1, 1]} : vector<16x128xf32> to vector<16x8xf32>
    %32 = vector.shape_cast %31 : vector<16x8xf32> to vector<2x8x8xf32>
    %33 = vector.extract_strided_slice %21 {offsets = [0, 40], sizes = [16, 8], strides = [1, 1]} : vector<16x128xf32> to vector<16x8xf32>
    %34 = vector.shape_cast %33 : vector<16x8xf32> to vector<2x8x8xf32>
    %35 = vector.extract_strided_slice %21 {offsets = [0, 48], sizes = [16, 8], strides = [1, 1]} : vector<16x128xf32> to vector<16x8xf32>
    %36 = vector.shape_cast %35 : vector<16x8xf32> to vector<2x8x8xf32>
    %37 = vector.extract_strided_slice %21 {offsets = [0, 56], sizes = [16, 8], strides = [1, 1]} : vector<16x128xf32> to vector<16x8xf32>
    %38 = vector.shape_cast %37 : vector<16x8xf32> to vector<2x8x8xf32>
    %39 = tpu.concatenate %32, %34, %36, %38 in 0 : vector<2x8x8xf32>, vector<2x8x8xf32>, vector<2x8x8xf32>, vector<2x8x8xf32> -> vector<8x8x8xf32>
    %40 = vector.extract_strided_slice %21 {offsets = [0, 64], sizes = [16, 8], strides = [1, 1]} : vector<16x128xf32> to vector<16x8xf32>
    %41 = vector.shape_cast %40 : vector<16x8xf32> to vector<2x8x8xf32>
    %42 = vector.extract_strided_slice %21 {offsets = [0, 72], sizes = [16, 8], strides = [1, 1]} : vector<16x128xf32> to vector<16x8xf32>
    %43 = vector.shape_cast %42 : vector<16x8xf32> to vector<2x8x8xf32>
    %44 = vector.extract_strided_slice %21 {offsets = [0, 80], sizes = [16, 8], strides = [1, 1]} : vector<16x128xf32> to vector<16x8xf32>
    %45 = vector.shape_cast %44 : vector<16x8xf32> to vector<2x8x8xf32>
    %46 = vector.extract_strided_slice %21 {offsets = [0, 88], sizes = [16, 8], strides = [1, 1]} : vector<16x128xf32> to vector<16x8xf32>
    %47 = vector.shape_cast %46 : vector<16x8xf32> to vector<2x8x8xf32>
    %48 = tpu.concatenate %41, %43, %45, %47 in 0 : vector<2x8x8xf32>, vector<2x8x8xf32>, vector<2x8x8xf32>, vector<2x8x8xf32> -> vector<8x8x8xf32>
    "tpu.trace_start"() <{level = 10 : i32, message = "hnd,hmd->hnm"}> : () -> ()
    %cst_11 = arith.constant dense<0.000000e+00> : vector<8x8x8xf32>
    %49 = tpu.matmul %30, %39, %cst_11 {dimension_numbers = #tpu.dot_dimension_numbers<[2], [2], [1], [1], [0, 0, 0, 1, 1, 1], [0], [0]>} : vector<8x8x8xf32>, vector<8x8x8xf32>, vector<8x8x8xf32> -> vector<8x8x8xf32>
    "tpu.trace_stop"() : () -> ()
    %cst_12 = arith.constant dense<0xFF800000> : vector<8x8xf32>
    %50 = vector.multi_reduction <maximumf>, %49, %cst_12 [2] : vector<8x8x8xf32> to vector<8x8xf32>
    %51 = vector.shape_cast %50 : vector<8x8xf32> to vector<8x8x1xf32>
    %52 = vector.broadcast %51 : vector<8x8x1xf32> to vector<8x8x8xf32>
    %53 = arith.subf %49, %52 : vector<8x8x8xf32>
    %54 = math.exp %53 : vector<8x8x8xf32>
    %cst_13 = arith.constant dense<0.000000e+00> : vector<8x8xf32>
    %55 = vector.multi_reduction <add>, %54, %cst_13 [2] : vector<8x8x8xf32> to vector<8x8xf32>
    %56 = vector.shape_cast %55 : vector<8x8xf32> to vector<8x8x1xf32>
    %57 = tpu.reciprocal %56 {approx = true} : vector<8x8x1xf32> -> vector<8x8x1xf32>
    %58 = vector.broadcast %57 : vector<8x8x1xf32> to vector<8x8x8xf32>
    %59 = arith.mulf %54, %58 : vector<8x8x8xf32>
    "tpu.trace_start"() <{level = 10 : i32, message = "hnm,hmd->hnd"}> : () -> ()
    %cst_14 = arith.constant dense<0.000000e+00> : vector<8x8x8xf32>
    %60 = tpu.matmul %59, %48, %cst_14 {dimension_numbers = #tpu.dot_dimension_numbers<[2], [1], [1], [2], [0, 0, 0, 1, 1, 2], [0], [0]>} : vector<8x8x8xf32>, vector<8x8x8xf32>, vector<8x8x8xf32> -> vector<8x8x8xf32>
    "tpu.trace_stop"() : () -> ()
    %61 = vector.extract_strided_slice %60 {offsets = [0, 0, 0], sizes = [2, 8, 8], strides = [1, 1, 1]} : vector<8x8x8xf32> to vector<2x8x8xf32>
    %62 = vector.shape_cast %61 : vector<2x8x8xf32> to vector<16x8xf32>
    %63 = vector.extract_strided_slice %60 {offsets = [2, 0, 0], sizes = [2, 8, 8], strides = [1, 1, 1]} : vector<8x8x8xf32> to vector<2x8x8xf32>
    %64 = vector.shape_cast %63 : vector<2x8x8xf32> to vector<16x8xf32>
    %65 = vector.extract_strided_slice %60 {offsets = [4, 0, 0], sizes = [2, 8, 8], strides = [1, 1, 1]} : vector<8x8x8xf32> to vector<2x8x8xf32>
    %66 = vector.shape_cast %65 : vector<2x8x8xf32> to vector<16x8xf32>
    %67 = vector.extract_strided_slice %60 {offsets = [6, 0, 0], sizes = [2, 8, 8], strides = [1, 1, 1]} : vector<8x8x8xf32> to vector<2x8x8xf32>
    %68 = vector.shape_cast %67 : vector<2x8x8xf32> to vector<16x8xf32>
    %69 = tpu.concatenate %62, %64, %66, %68 in 1 : vector<16x8xf32>, vector<16x8xf32>, vector<16x8xf32>, vector<16x8xf32> -> vector<16x32xf32>
    %70 = arith.truncf %69 : vector<16x32xf32> to vector<16x32xbf16>
    %c0_15 = arith.constant 0 : index
    %c0_16 = arith.constant 0 : index
    %71 = vector.load %arg3[%c0_15, %c0_16] : memref<32x32xbf16, #tpu.memory_space<vmem>>, vector<32x32xbf16>
    %cst_17 = arith.constant dense<0.000000e+00> : vector<16x32xf32>
    %72 = tpu.matmul %70, %71, %cst_17 {dimension_numbers = #tpu.dot_dimension_numbers<[1], [0], [0], [1], [0, 0, 1, 1], [], []>} : vector<16x32xbf16>, vector<32x32xbf16>, vector<16x32xf32> -> vector<16x32xf32>
    %73 = vector.broadcast %4 : vector<1x32xf32> to vector<16x32xf32>
    %74 = arith.addf %72, %73 : vector<16x32xf32>
    %75 = arith.addf %0, %74 : vector<16x32xf32>
    %76 = arith.mulf %75, %75 : vector<16x32xf32>
    %cst_18 = arith.constant dense<0.000000e+00> : vector<16xf32>
    %77 = vector.multi_reduction <add>, %76, %cst_18 [1] : vector<16x32xf32> to vector<16xf32>
    %78 = vector.shape_cast %77 : vector<16xf32> to vector<16x1xf32>
    %cst_19 = arith.constant 3.200000e+01 : f32
    %79 = vector.broadcast %cst_19 : f32 to vector<16x1xf32>
    %80 = arith.divf %78, %79 : vector<16x1xf32>
    %cst_20 = arith.constant 9.99999997E-7 : f32
    %81 = vector.broadcast %cst_20 : f32 to vector<16x1xf32>
    %82 = arith.addf %80, %81 : vector<16x1xf32>
    %83 = math.rsqrt %82 : vector<16x1xf32>
    %84 = vector.broadcast %83 : vector<16x1xf32> to vector<16x32xf32>
    %85 = arith.mulf %75, %84 : vector<16x32xf32>
    %86 = vector.broadcast %3 : vector<1x32xf32> to vector<16x32xf32>
    %87 = arith.mulf %85, %86 : vector<16x32xf32>
    %88 = arith.truncf %87 : vector<16x32xf32> to vector<16x32xbf16>
    %c0_21 = arith.constant 0 : index
    %c0_22 = arith.constant 0 : index
    %89 = vector.load %arg4[%c0_21, %c0_22] : memref<32x128xbf16, #tpu.memory_space<vmem>>, vector<32x128xbf16>
    %cst_23 = arith.constant dense<0.000000e+00> : vector<16x128xf32>
    %90 = tpu.matmul %88, %89, %cst_23 {dimension_numbers = #tpu.dot_dimension_numbers<[1], [0], [0], [1], [0, 0, 1, 1], [], []>} : vector<16x32xbf16>, vector<32x128xbf16>, vector<16x128xf32> -> vector<16x128xf32>
    %91 = vector.extract_strided_slice %90 {offsets = [0, 0], sizes = [16, 64], strides = [1, 1]} : vector<16x128xf32> to vector<16x64xf32>
    %92 = vector.extract_strided_slice %90 {offsets = [0, 64], sizes = [16, 64], strides = [1, 1]} : vector<16x128xf32> to vector<16x64xf32>
    %cst_24 = arith.constant 5.000000e-01 : f32
    %93 = vector.broadcast %cst_24 : f32 to vector<16x64xf32>
    %94 = arith.mulf %93, %91 : vector<16x64xf32>
    %95 = math.tanh %94 : vector<16x64xf32>
    %cst_25 = arith.constant 5.000000e-01 : f32
    %96 = vector.broadcast %cst_25 : f32 to vector<16x64xf32>
    %97 = arith.mulf %96, %95 : vector<16x64xf32>
    %cst_26 = arith.constant 5.000000e-01 : f32
    %98 = vector.broadcast %cst_26 : f32 to vector<16x64xf32>
    %99 = arith.addf %97, %98 : vector<16x64xf32>
    %100 = arith.mulf %91, %99 : vector<16x64xf32>
    %101 = arith.mulf %100, %92 : vector<16x64xf32>
    %102 = arith.truncf %101 : vector<16x64xf32> to vector<16x64xbf16>
    %c0_27 = arith.constant 0 : index
    %c0_28 = arith.constant 0 : index
    %103 = vector.load %arg5[%c0_27, %c0_28] : memref<64x32xbf16, #tpu.memory_space<vmem>>, vector<64x32xbf16>
    %cst_29 = arith.constant dense<0.000000e+00> : vector<16x32xf32>
    %104 = tpu.matmul %102, %103, %cst_29 {dimension_numbers = #tpu.dot_dimension_numbers<[1], [0], [0], [1], [0, 0, 1, 1], [], []>} : vector<16x64xbf16>, vector<64x32xbf16>, vector<16x32xf32> -> vector<16x32xf32>
    %105 = arith.addf %75, %104 : vector<16x32xf32>
    %c0_30 = arith.constant 0 : index
    %c0_31 = arith.constant 0 : index
    %106 = vector.load %arg6[%c0_30, %c0_31] : memref<16x32xf32, #tpu.memory_space<vmem>>, vector<16x32xf32>
    tpu.vector_store %arg6[%c0_30, %c0_31], %105 {strides = array<i32>} : memref<16x32xf32, #tpu.memory_space<vmem>>, vector<16x32xf32>,
    return
  }
}

</mosaic_0001>

<llo_original>
// kernel: encoder_layer.1
$region0: #{encoder_layer.1}
  #allocation0 [shape = 'u32[]', space=smem, size = 0x4, offset = 0x4, fixed_abs, tag = 'smem constant byte address 0x4 - core index']
  #allocation1 [shape = 'u32[72,128]{1,0:T(1,128)}', space=vmem, size = 0x9000, scoped, tag = 'internal scratch']
  %s0 = inlined_call_operand.vmem [shape: f32[16,32], index: 0, kind: input, shape index: {}]
  %s1 = inlined_call_operand.hbm [shape: f32[4,128], index: 1, kind: input, shape index: {}]
  %s2 = inlined_call_operand.vmem [shape: bf16[32,128], index: 2, kind: input, shape index: {}]
  %s3 = inlined_call_operand.vmem [shape: bf16[32,32], index: 3, kind: input, shape index: {}]
  %s4 = inlined_call_operand.hbm [shape: bf16[32,128], index: 4, kind: input, shape index: {}]
  %s5 = inlined_call_operand.vmem [shape: bf16[64,32], index: 5, kind: input, shape index: {}]
  %s6 = inlined_call_operand.hbm [shape: f32[16,32], index: 6, kind: output, shape index: {}]
  %s7 = sld [smem:[#allocation0]]
  $region42: #{encoder_layer.1} parent=0
    _
  %s9 = ssub.s32 1, %s7
  %s10 = scalar_select 0, %s9, %s7
  $region1: #{encoder_layer.1} parent=0
    #allocation2 [shape = 'u8[2048]{0}', space=vmem, size = 0x800, scoped, tag = 'input window, operand 1, single buffered']
    #allocation3 [shape = 's32[1]{0}', space=sflag, size = 0x4, scoped, tag = 'scoped memory for encoder_layer.1']
    #allocation4 [shape = 's32[1]{0}', space=sflag, size = 0x4, scoped, tag = 'scoped memory for encoder_layer.1']
    #allocation5 [shape = 'u8[8192]{0}', space=vmem, size = 0x2000, scoped, tag = 'input window, operand 4, single buffered']
    #allocation6 [shape = 's32[1]{0}', space=sflag, size = 0x4, scoped, tag = 'scoped memory for encoder_layer.1']
    #allocation7 [shape = 'u8[8192]{0}', space=vmem, size = 0x2000, scoped, tag = 'output window, operand 0, single buffered']
    %11 = vsyncpa [#allocation3], 0
    %12 = vsyncpa [#allocation6], 0
    %13 = vsyncpa [#allocation4], 0
    // Predicated region
    $region2: #{encoder_layer.1} parent=1 // pred_check
      _
    $region3: #{encoder_layer.1} parent=1 // pred_check_branch
      %15 = sbr.rel (0) target = $region5
    $region4: #{encoder_layer.1} parent=1 // pred_region
      _
    $region5: #{encoder_layer.1} parent=1 // pred_fallthru
      _
    // Predicated region
    $region6: #{encoder_layer.1} parent=1 // pred_check
      _
    $region7: #{encoder_layer.1} parent=1 // pred_check_branch
      %17 = sbr.rel (0) target = $region9
    $region8: #{encoder_layer.1} parent=1 // pred_region
      %19 = vsyncadd [#allocation3], 0
      %s21 = sshll.u32 %s1, 4
      %s22 = int_to_ptr.hbm [resolvable:$true] %s21
      %s23 = sshll.u32 [#allocation2], 4
      %s24 = int_to_ptr.vmem [resolvable:$true] %s23
      %26 = dma.hbm_to_vmem [thread:$0]  %s22, 64, %s24, [#allocation3]
    $region9: #{encoder_layer.1} parent=1 // pred_fallthru
      _
    // Predicated region
    $region10: #{encoder_layer.1} parent=1 // pred_check
      _
    $region11: #{encoder_layer.1} parent=1 // pred_check_branch
      %28 = sbr.rel (0) target = $region13
    $region12: #{encoder_layer.1} parent=1 // pred_region
      _
    $region13: #{encoder_layer.1} parent=1 // pred_fallthru
      _
    // Predicated region
    $region14: #{encoder_layer.1} parent=1 // pred_check
      _
    $region15: #{encoder_layer.1} parent=1 // pred_check_branch
      %30 = sbr.rel (0) target = $region17
    $region16: #{encoder_layer.1} parent=1 // pred_region
      _
    $region17: #{encoder_layer.1} parent=1 // pred_fallthru
      _
    // Predicated region
    $region18: #{encoder_layer.1} parent=1 // pred_check
      _
    $region19: #{encoder_layer.1} parent=1 // pred_check_branch
      %32 = sbr.rel (0) target = $region21
    $region20: #{encoder_layer.1} parent=1 // pred_region
      %34 = vsyncadd [#allocation6], 0
      %s35 = sshll.u32 %s4, 4
      %s36 = int_to_ptr.hbm [resolvable:$true] %s35
      %s37 = sshll.u32 [#allocation5], 4
      %s38 = int_to_ptr.vmem [resolvable:$true] %s37
      %43 = dma.hbm_to_vmem [thread:$0]  %s36, 256, %s38, [#allocation6], 64, 64, 4
    $region21: #{encoder_layer.1} parent=1 // pred_fallthru
      _
    // Predicated region
    $region22: #{encoder_layer.1} parent=1 // pred_check
      _
    $region23: #{encoder_layer.1} parent=1 // pred_check_branch
      %45 = sbr.rel (0) target = $region25
    $region24: #{encoder_layer.1} parent=1 // pred_region
      _
    $region25: #{encoder_layer.1} parent=1 // pred_fallthru
      _
    // Predicated region
    $region26: #{encoder_layer.1} parent=1 // pred_check
      _
    $region27: #{encoder_layer.1} parent=1 // pred_check_branch
      %47 = sbr.rel (0) target = $region29
    $region28: #{encoder_layer.1} parent=1 // pred_region
      %49 = dma.done [#allocation3], 64
    $region29: #{encoder_layer.1} parent=1 // pred_fallthru
      _
    // Predicated region
    $region30: #{encoder_layer.1} parent=1 // pred_check
      _
    $region31: #{encoder_layer.1} parent=1 // pred_check_branch
      %51 = sbr.rel (0) target = $region33
    $region32: #{encoder_layer.1} parent=1 // pred_region
      %53 = dma.done [#allocation6], 256
    $region33: #{encoder_layer.1} parent=1 // pred_fallthru
      _
    %v55 = vld [vmem:[%s0] sm:$0xff]
    %v56 = vld [vmem:[%s0 + $0x8] sm:$0xff]
    %v57 = vld [vmem:[#allocation2] sm:$0x1]
    %v58 = vld [vmem:[#allocation2 + $0x1] sm:$0x1]
    %v59 = vld [vmem:[#allocation2 + $0x2] sm:$0x1]
    %v60 = vld [vmem:[#allocation2 + $0x3] sm:$0x1]
    %v61 = vmul.f32 %v55, %v55
    %v62 = vmul.f32 %v56, %v56
    %vm63 = vcmask 261120
    %v64 = vsel %vm63, %v61, 0.0
    %65 = vadd.xlane.f32.xlu0 %v64
    %v66 = vpop.xlane.xlu0 %65
    %v67 = vsel %vm63, %v62, 0.0
    %68 = vadd.xlane.f32.xlu0 %v67
    %v69 = vpop.xlane.xlu0 %68
    %v70 = vrcp.pop 32.0
    %v71 = vmul.f32 32.0, %v70
    %v72 = vsub.f32 1.0, %v71
    %v73 = vmul.f32 %v70, %v72
    %v74 = vadd.f32 %v70, %v73
    %vm75 = vweird.f32 %v70
    %v76 = vsel %vm75, %v70, %v74
    %v77 = vmul.f32 %v66, %v76
    %v78 = vmul.f32 %v69, %v76
    %v79 = vadd.f32 %v77, 1e-06
    %v80 = vadd.f32 %v78, 1e-06
    %v81 = vrsqrt.pop %v79
    %v82 = vmul.f32 %v81, %v79
    %v83 = vmul.f32 %v82, %v81
    %v84 = vmul.f32 0.5, %v83
    %v85 = vsub.f32 1.5, %v84
    %v86 = vmul.f32 %v81, %v85
    %vm87 = vweird.f32 %v79
    %vm88 = vweird.f32 %v81
    %vm89 = vmor %vm87, %vm88
    %v90 = vsel %vm89, %v81, %v86
    %v91 = vrsqrt.pop %v80
    %v92 = vmul.f32 %v91, %v80
    %v93 = vmul.f32 %v92, %v91
    %v94 = vmul.f32 0.5, %v93
    %v95 = vsub.f32 1.5, %v94
    %v96 = vmul.f32 %v91, %v95
    %vm97 = vweird.f32 %v80
    %vm98 = vweird.f32 %v91
    %vm99 = vmor %vm97, %vm98
    %v100 = vsel %vm99, %v91, %v96
    %v101 = vmul.f32 %v55, %v90
    %v102 = vmul.f32 %v56, %v100
    %v103 = vperm.slane %v58, 0
    %v104 = vmul.f32 %v101, %v103
    %v105 = vmul.f32 %v102, %v103
    %v106 = vpack.c.bf16 %v105, %v104
    %v107 = vld [vmem:[%s2] sm:$0xf]
    %v108 = vld [vmem:[%s2 + $0x4] sm:$0xf]
    %v109 = vld [vmem:[%s2 + $0x8] sm:$0xf]
    %v110 = vld [vmem:[%s2 + $0xc] sm:$0xf]
    %v111 = vperm.slane %v57, 0
    %v116 = vunpack.c.l.b16 %v107
    %v117 = vunpack.c.l.b16 %v108
    %v118 = vunpack.c.l.b16 %v109
    %v119 = vunpack.c.l.b16 %v110
    %v120 = vpack.c.b16 %v117, %v116
    %v121 = vpack.c.b16 %v119, %v118
    %v125 = vsel %vm63, %v106, 0
    %127 = vmatpush.bf16.msra.mxu0 0
    %128 = vmatpush.bf16.msra.mxu0 0
    %129 = vmatpush.bf16.msra.mxu0 0
    %130 = vmatpush.bf16.msra.mxu0 0
    %131 = vmatpush.bf16.msra.mxu0 0
    %132 = vmatpush.bf16.msra.mxu0 0
    %133 = vmatpush.bf16.msra.mxu0 %v121
    %134 = vmatpush.bf16.msra.mxu0 %v120
    %135 = vmatmul.bf16.gmra.mxu0 %v125
    %v136 = vpop.f32.mrf.mxu0
    %v137 = vadd.f32 %v111, %v136
    %v138 = vpop.f32.mrf.mxu0
    %v139 = vadd.f32 %v111, %v138
    %140 = vdwg.mxu0
    %143 = vrot.lane.b32.xlu0 %v137, 120
    %v144 = vpop.permute.xlu0 %143
    %145 = vrot.lane.b32.xlu0 %v139, 120
    %v146 = vpop.permute.xlu0 %145
    %147 = vrot.lane.b32.xlu0 %v137, 112
    %v148 = vpop.permute.xlu0 %147
    %149 = vrot.lane.b32.xlu0 %v139, 112
    %v150 = vpop.permute.xlu0 %149
    %151 = vrot.lane.b32.xlu0 %v137, 104
    %v152 = vpop.permute.xlu0 %151
    %153 = vrot.lane.b32.xlu0 %v139, 104
    %v154 = vpop.permute.xlu0 %153
    %155 = vrot.lane.b32.xlu0 %v137, 96
    %v156 = vpop.permute.xlu0 %155
    %vm157 = vcmask 64512
    %v158 = vsel %vm157, %v137, 0
    %v160 = vsel %vm157, %v156, 0
    %162 = vmatpush.xpose.msra.mxu0 0.0
    %163 = vmatpush.xpose.msra.mxu0 0.0
    %164 = vmatpush.xpose.msra.mxu0 0.0
    %165 = vmatpush.xpose.msra.mxu0 0.0
    %166 = vmatpush.xpose.msra.mxu0 0.0
    %167 = vmatpush.xpose.msra.mxu0 0.0
    %168 = vmatpush.xpose.msra.mxu0 0.0
    %169 = vmatpush.xpose.msra.mxu0 0.0
    %170 = vmatpush.xpose.msra.mxu0 0.0
    %171 = vmatpush.xpose.msra.mxu0 0.0
    %172 = vmatpush.xpose.msra.mxu0 0.0
    %173 = vmatpush.xpose.msra.mxu0 0.0
    %174 = vmatpush.xpose.msra.mxu0 0.0
    %175 = vmatpush.xpose.msra.mxu0 0.0
    %176 = vmatpush.xpose.msra.mxu0 0.0
    %177 = vmatpush.xpose.msra.mxu0 %v160
    %178 = vmatmul.f32.gmra.mxu0 %v158
    %v179 = vpop.f32.mrf.mxu0
    %v180 = vadd.f32 0.0, %v179
    %181 = vdwg.mxu0
    %182 = vrot.lane.b32.xlu0 %v139, 96
    %v183 = vpop.permute.xlu0 %182
    %v184 = vsel %vm157, %v139, 0
    %v186 = vsel %vm157, %v183, 0
    %188 = vmatpush.xpose.msra.mxu0 0.0
    %189 = vmatpush.xpose.msra.mxu0 0.0
    %190 = vmatpush.xpose.msra.mxu0 0.0
    %191 = vmatpush.xpose.msra.mxu0 0.0
    %192 = vmatpush.xpose.msra.mxu0 0.0
    %193 = vmatpush.xpose.msra.mxu0 0.0
    %194 = vmatpush.xpose.msra.mxu0 0.0
    %195 = vmatpush.xpose.msra.mxu0 0.0
    %196 = vmatpush.xpose.msra.mxu0 0.0
    %197 = vmatpush.xpose.msra.mxu0 0.0
    %198 = vmatpush.xpose.msra.mxu0 0.0
    %199 = vmatpush.xpose.msra.mxu0 0.0
    %200 = vmatpush.xpose.msra.mxu0 0.0
    %201 = vmatpush.xpose.msra.mxu0 0.0
    %202 = vmatpush.xpose.msra.mxu0 0.0
    %203 = vmatpush.xpose.msra.mxu0 %v186
    %204 = vmatmul.f32.gmra.mxu0 %v184
    %v205 = vpop.f32.mrf.mxu0
    %v206 = vadd.f32 0.0, %v205
    %207 = vdwg.mxu0
    %208 = vrot.lane.b32.xlu0 %v144, 96
    %v209 = vpop.permute.xlu0 %208
    %v210 = vsel %vm157, %v144, 0
    %v212 = vsel %vm157, %v209, 0
    %214 = vmatpush.xpose.msra.mxu0 0.0
    %215 = vmatpush.xpose.msra.mxu0 0.0
    %216 = vmatpush.xpose.msra.mxu0 0.0
    %217 = vmatpush.xpose.msra.mxu0 0.0
    %218 = vmatpush.xpose.msra.mxu0 0.0
    %219 = vmatpush.xpose.msra.mxu0 0.0
    %220 = vmatpush.xpose.msra.mxu0 0.0
    %221 = vmatpush.xpose.msra.mxu0 0.0
    %222 = vmatpush.xpose.msra.mxu0 0.0
    %223 = vmatpush.xpose.msra.mxu0 0.0
    %224 = vmatpush.xpose.msra.mxu0 0.0
    %225 = vmatpush.xpose.msra.mxu0 0.0
    %226 = vmatpush.xpose.msra.mxu0 0.0
    %227 = vmatpush.xpose.msra.mxu0 0.0
    %228 = vmatpush.xpose.msra.mxu0 0.0
    %229 = vmatpush.xpose.msra.mxu0 %v212
    %230 = vmatmul.f32.gmra.mxu0 %v210
    %v231 = vpop.f32.mrf.mxu0
    %v232 = vadd.f32 0.0, %v231
    %233 = vdwg.mxu0
    %234 = vrot.lane.b32.xlu0 %v146, 96
    %v235 = vpop.permute.xlu0 %234
    %v236 = vsel %vm157, %v146, 0
    %v238 = vsel %vm157, %v235, 0
    %240 = vmatpush.xpose.msra.mxu0 0.0
    %241 = vmatpush.xpose.msra.mxu0 0.0
    %242 = vmatpush.xpose.msra.mxu0 0.0
    %243 = vmatpush.xpose.msra.mxu0 0.0
    %244 = vmatpush.xpose.msra.mxu0 0.0
    %245 = vmatpush.xpose.msra.mxu0 0.0
    %246 = vmatpush.xpose.msra.mxu0 0.0
    %247 = vmatpush.xpose.msra.mxu0 0.0
    %248 = vmatpush.xpose.msra.mxu0 0.0
    %249 = vmatpush.xpose.msra.mxu0 0.0
    %250 = vmatpush.xpose.msra.mxu0 0.0
    %251 = vmatpush.xpose.msra.mxu0 0.0
    %252 = vmatpush.xpose.msra.mxu0 0.0
    %253 = vmatpush.xpose.msra.mxu0 0.0
    %254 = vmatpush.xpose.msra.mxu0 0.0
    %255 = vmatpush.xpose.msra.mxu0 %v238
    %256 = vmatmul.f32.gmra.mxu0 %v236
    %v257 = vpop.f32.mrf.mxu0
    %v258 = vadd.f32 0.0, %v257
    %259 = vdwg.mxu0
    %260 = vrot.lane.b32.xlu0 %v148, 96
    %v261 = vpop.permute.xlu0 %260
    %v262 = vsel %vm157, %v148, 0
    %v264 = vsel %vm157, %v261, 0
    %266 = vmatpush.xpose.msra.mxu0 0.0
    %267 = vmatpush.xpose.msra.mxu0 0.0
    %268 = vmatpush.xpose.msra.mxu0 0.0
    %269 = vmatpush.xpose.msra.mxu0 0.0
    %270 = vmatpush.xpose.msra.mxu0 0.0
    %271 = vmatpush.xpose.msra.mxu0 0.0
    %272 = vmatpush.xpose.msra.mxu0 0.0
    %273 = vmatpush.xpose.msra.mxu0 0.0
    %274 = vmatpush.xpose.msra.mxu0 0.0
    %275 = vmatpush.xpose.msra.mxu0 0.0
    %276 = vmatpush.xpose.msra.mxu0 0.0
    %277 = vmatpush.xpose.msra.mxu0 0.0
    %278 = vmatpush.xpose.msra.mxu0 0.0
    %279 = vmatpush.xpose.msra.mxu0 0.0
    %280 = vmatpush.xpose.msra.mxu0 0.0
    %281 = vmatpush.xpose.msra.mxu0 %v264
    %282 = vmatmul.f32.gmra.mxu0 %v262
    %v283 = vpop.f32.mrf.mxu0
    %v284 = vadd.f32 0.0, %v283
    %285 = vdwg.mxu0
    %286 = vrot.lane.b32.xlu0 %v150, 96
    %v287 = vpop.permute.xlu0 %286
    %v288 = vsel %vm157, %v150, 0
    %v290 = vsel %vm157, %v287, 0
    %292 = vmatpush.xpose.msra.mxu0 0.0
    %293 = vmatpush.xpose.msra.mxu0 0.0
    %294 = vmatpush.xpose.msra.mxu0 0.0
    %295 = vmatpush.xpose.msra.mxu0 0.0
    %296 = vmatpush.xpose.msra.mxu0 0.0
    %297 = vmatpush.xpose.msra.mxu0 0.0
    %298 = vmatpush.xpose.msra.mxu0 0.0
    %299 = vmatpush.xpose.msra.mxu0 0.0
    %300 = vmatpush.xpose.msra.mxu0 0.0
    %301 = vmatpush.xpose.msra.mxu0 0.0
    %302 = vmatpush.xpose.msra.mxu0 0.0
    %303 = vmatpush.xpose.msra.mxu0 0.0
    %304 = vmatpush.xpose.msra.mxu0 0.0
    %305 = vmatpush.xpose.msra.mxu0 0.0
    %306 = vmatpush.xpose.msra.mxu0 0.0
    %307 = vmatpush.xpose.msra.mxu0 %v290
    %308 = vmatmul.f32.gmra.mxu0 %v288
    %v309 = vpop.f32.mrf.mxu0
    %v310 = vadd.f32 0.0, %v309
    %311 = vdwg.mxu0
    %312 = vrot.lane.b32.xlu0 %v152, 96
    %v313 = vpop.permute.xlu0 %312
    %v314 = vsel %vm157, %v152, 0
    %v316 = vsel %vm157, %v313, 0
    %318 = vmatpush.xpose.msra.mxu0 0.0
    %319 = vmatpush.xpose.msra.mxu0 0.0
    %320 = vmatpush.xpose.msra.mxu0 0.0
    %321 = vmatpush.xpose.msra.mxu0 0.0
    %322 = vmatpush.xpose.msra.mxu0 0.0
    %323 = vmatpush.xpose.msra.mxu0 0.0
    %324 = vmatpush.xpose.msra.mxu0 0.0
    %325 = vmatpush.xpose.msra.mxu0 0.0
    %326 = vmatpush.xpose.msra.mxu0 0.0
    %327 = vmatpush.xpose.msra.mxu0 0.0
    %328 = vmatpush.xpose.msra.mxu0 0.0
    %329 = vmatpush.xpose.msra.mxu0 0.0
    %330 = vmatpush.xpose.msra.mxu0 0.0
    %331 = vmatpush.xpose.msra.mxu0 0.0
    %332 = vmatpush.xpose.msra.mxu0 0.0
    %333 = vmatpush.xpose.msra.mxu0 %v316
    %334 = vmatmul.f32.gmra.mxu0 %v314
    %v335 = vpop.f32.mrf.mxu0
    %v336 = vadd.f32 0.0, %v335
    %337 = vdwg.mxu0
    %338 = vrot.lane.b32.xlu0 %v154, 96
    %v339 = vpop.permute.xlu0 %338
    %v340 = vsel %vm157, %v154, 0
    %v342 = vsel %vm157, %v339, 0
    %344 = vmatpush.xpose.msra.mxu0 0.0
    %345 = vmatpush.xpose.msra.mxu0 0.0
    %346 = vmatpush.xpose.msra.mxu0 0.0
    %347 = vmatpush.xpose.msra.mxu0 0.0
    %348 = vmatpush.xpose.msra.mxu0 0.0
    %349 = vmatpush.xpose.msra.mxu0 0.0
    %350 = vmatpush.xpose.msra.mxu0 0.0
    %351 = vmatpush.xpose.msra.mxu0 0.0
    %352 = vmatpush.xpose.msra.mxu0 0.0
    %353 = vmatpush.xpose.msra.mxu0 0.0
    %354 = vmatpush.xpose.msra.mxu0 0.0
    %355 = vmatpush.xpose.msra.mxu0 0.0
    %356 = vmatpush.xpose.msra.mxu0 0.0
    %357 = vmatpush.xpose.msra.mxu0 0.0
    %358 = vmatpush.xpose.msra.mxu0 0.0
    %359 = vmatpush.xpose.msra.mxu0 %v342
    %360 = vmatmul.f32.gmra.mxu0 %v340
    %v361 = vpop.f32.mrf.mxu0
    %v362 = vadd.f32 0.0, %v361
    %363 = vdwg.mxu0
    %v364 = vsel %vm157, %v180, -inf
    %365 = vmax.xlane.f32.xlu0 %v364
    %v366 = vpop.xlane.xlu0 %365
    %v367 = vsel %vm157, %v206, -inf
    %368 = vmax.xlane.f32.xlu0 %v367
    %v369 = vpop.xlane.xlu0 %368
    %v370 = vsel %vm157, %v232, -inf
    %371 = vmax.xlane.f32.xlu0 %v370
    %v372 = vpop.xlane.xlu0 %371
    %v373 = vsel %vm157, %v258, -inf
    %374 = vmax.xlane.f32.xlu0 %v373
    %v375 = vpop.xlane.xlu0 %374
    %v376 = vsel %vm157, %v284, -inf
    %377 = vmax.xlane.f32.xlu0 %v376
    %v378 = vpop.xlane.xlu0 %377
    %v379 = vsel %vm157, %v310, -inf
    %380 = vmax.xlane.f32.xlu0 %v379
    %v381 = vpop.xlane.xlu0 %380
    %v382 = vsel %vm157, %v336, -inf
    %383 = vmax.xlane.f32.xlu0 %v382
    %v384 = vpop.xlane.xlu0 %383
    %v385 = vsel %vm157, %v362, -inf
    %386 = vmax.xlane.f32.xlu0 %v385
    %v387 = vpop.xlane.xlu0 %386
    %v388 = vsub.f32 %v180, %v366
    %v389 = vsub.f32 %v206, %v369
    %v390 = vsub.f32 %v232, %v372
    %v391 = vsub.f32 %v258, %v375
    %v392 = vsub.f32 %v284, %v378
    %v393 = vsub.f32 %v310, %v381
    %v394 = vsub.f32 %v336, %v384
    %v395 = vsub.f32 %v362, %v387
    %v396 = vmul.f32 %v388, 1.442695
    %v397 = vpow.pop %v396
    %v398 = vmul.f32 %v389, 1.442695
    %v399 = vpow.pop %v398
    %v400 = vmul.f32 %v390, 1.442695
    %v401 = vpow.pop %v400
    %v402 = vmul.f32 %v391, 1.442695
    %v403 = vpow.pop %v402
    %v404 = vmul.f32 %v392, 1.442695
    %v405 = vpow.pop %v404
    %v406 = vmul.f32 %v393, 1.442695
    %v407 = vpow.pop %v406
    %v408 = vmul.f32 %v394, 1.442695
    %v409 = vpow.pop %v408
    %v410 = vmul.f32 %v395, 1.442695
    %v411 = vpow.pop %v410
    %v412 = vsel %vm157, %v397, 0.0
    %413 = vadd.xlane.f32.xlu0 %v412
    %v414 = vpop.xlane.xlu0 %413
    %v415 = vsel %vm157, %v399, 0.0
    %416 = vadd.xlane.f32.xlu0 %v415
    %v417 = vpop.xlane.xlu0 %416
    %v418 = vsel %vm157, %v401, 0.0
    %419 = vadd.xlane.f32.xlu0 %v418
    %v420 = vpop.xlane.xlu0 %419
    %v421 = vsel %vm157, %v403, 0.0
    %422 = vadd.xlane.f32.xlu0 %v421
    %v423 = vpop.xlane.xlu0 %422
    %v424 = vsel %vm157, %v405, 0.0
    %425 = vadd.xlane.f32.xlu0 %v424
    %v426 = vpop.xlane.xlu0 %425
    %v427 = vsel %vm157, %v407, 0.0
    %428 = vadd.xlane.f32.xlu0 %v427
    %v429 = vpop.xlane.xlu0 %428
    %v430 = vsel %vm157, %v409, 0.0
    %431 = vadd.xlane.f32.xlu0 %v430
    %v432 = vpop.xlane.xlu0 %431
    %v433 = vsel %vm157, %v411, 0.0
    %434 = vadd.xlane.f32.xlu0 %v433
    %v435 = vpop.xlane.xlu0 %434
    %v436 = vrcp.pop %v414
    %v437 = vrcp.pop %v417
    %v438 = vrcp.pop %v420
    %v439 = vrcp.pop %v423
    %v440 = vrcp.pop %v426
    %v441 = vrcp.pop %v429
    %v442 = vrcp.pop %v432
    %v443 = vrcp.pop %v435
    %v444 = vmul.f32 %v397, %v436
    %v445 = vmul.f32 %v399, %v437
    %v446 = vmul.f32 %v401, %v438
    %v447 = vmul.f32 %v403, %v439
    %v448 = vmul.f32 %v405, %v440
    %v449 = vmul.f32 %v407, %v441
    %v450 = vmul.f32 %v409, %v442
    %v451 = vmul.f32 %v411, %v443
    %452 = vrot.lane.b32.xlu0 %v137, 64
    %v453 = vpop.permute.xlu0 %452
    %v456 = vsel %vm157, %v444, 0
    %458 = vmatpush.msra.mxu0 0.0
    %459 = vmatpush.msra.mxu0 0.0
    %460 = vmatpush.msra.mxu0 0.0
    %461 = vmatpush.msra.mxu0 0.0
    %462 = vmatpush.msra.mxu0 0.0
    %463 = vmatpush.msra.mxu0 0.0
    %464 = vmatpush.msra.mxu0 0.0
    %465 = vmatpush.msra.mxu0 0.0
    %466 = vmatpush.msra.mxu0 0.0
    %467 = vmatpush.msra.mxu0 0.0
    %468 = vmatpush.msra.mxu0 0.0
    %469 = vmatpush.msra.mxu0 0.0
    %470 = vmatpush.msra.mxu0 0.0
    %471 = vmatpush.msra.mxu0 0.0
    %472 = vmatpush.msra.mxu0 0.0
    %473 = vmatpush.msra.mxu0 %v453
    %474 = vmatmul.f32.gmra.mxu0 %v456
    %v475 = vpop.f32.mrf.mxu0
    %v476 = vadd.f32 0.0, %v475
    %477 = vdwg.mxu0
    %478 = vrot.lane.b32.xlu0 %v139, 64
    %v479 = vpop.permute.xlu0 %478
    %v482 = vsel %vm157, %v445, 0
    %484 = vmatpush.msra.mxu0 0.0
    %485 = vmatpush.msra.mxu0 0.0
    %486 = vmatpush.msra.mxu0 0.0
    %487 = vmatpush.msra.mxu0 0.0
    %488 = vmatpush.msra.mxu0 0.0
    %489 = vmatpush.msra.mxu0 0.0
    %490 = vmatpush.msra.mxu0 0.0
    %491 = vmatpush.msra.mxu0 0.0
    %492 = vmatpush.msra.mxu0 0.0
    %493 = vmatpush.msra.mxu0 0.0
    %494 = vmatpush.msra.mxu0 0.0
    %495 = vmatpush.msra.mxu0 0.0
    %496 = vmatpush.msra.mxu0 0.0
    %497 = vmatpush.msra.mxu0 0.0
    %498 = vmatpush.msra.mxu0 0.0
    %499 = vmatpush.msra.mxu0 %v479
    %500 = vmatmul.f32.gmra.mxu0 %v482
    %v501 = vpop.f32.mrf.mxu0
    %v502 = vadd.f32 0.0, %v501
    %503 = vdwg.mxu0
    %504 = vrot.lane.b32.xlu0 %v144, 64
    %v505 = vpop.permute.xlu0 %504
    %v508 = vsel %vm157, %v446, 0
    %510 = vmatpush.msra.mxu0 0.0
    %511 = vmatpush.msra.mxu0 0.0
    %512 = vmatpush.msra.mxu0 0.0
    %513 = vmatpush.msra.mxu0 0.0
    %514 = vmatpush.msra.mxu0 0.0
    %515 = vmatpush.msra.mxu0 0.0
    %516 = vmatpush.msra.mxu0 0.0
    %517 = vmatpush.msra.mxu0 0.0
    %518 = vmatpush.msra.mxu0 0.0
    %519 = vmatpush.msra.mxu0 0.0
    %520 = vmatpush.msra.mxu0 0.0
    %521 = vmatpush.msra.mxu0 0.0
    %522 = vmatpush.msra.mxu0 0.0
    %523 = vmatpush.msra.mxu0 0.0
    %524 = vmatpush.msra.mxu0 0.0
    %525 = vmatpush.msra.mxu0 %v505
    %526 = vmatmul.f32.gmra.mxu0 %v508
    %v527 = vpop.f32.mrf.mxu0
    %v528 = vadd.f32 0.0, %v527
    %529 = vdwg.mxu0
    %530 = vrot.lane.b32.xlu0 %v146, 64
    %v531 = vpop.permute.xlu0 %530
    %v534 = vsel %vm157, %v447, 0
    %536 = vmatpush.msra.mxu0 0.0
    %537 = vmatpush.msra.mxu0 0.0
    %538 = vmatpush.msra.mxu0 0.0
    %539 = vmatpush.msra.mxu0 0.0
    %540 = vmatpush.msra.mxu0 0.0
    %541 = vmatpush.msra.mxu0 0.0
    %542 = vmatpush.msra.mxu0 0.0
    %543 = vmatpush.msra.mxu0 0.0
    %544 = vmatpush.msra.mxu0 0.0
    %545 = vmatpush.msra.mxu0 0.0
    %546 = vmatpush.msra.mxu0 0.0
    %547 = vmatpush.msra.mxu0 0.0
    %548 = vmatpush.msra.mxu0 0.0
    %549 = vmatpush.msra.mxu0 0.0
    %550 = vmatpush.msra.mxu0 0.0
    %551 = vmatpush.msra.mxu0 %v531
    %552 = vmatmul.f32.gmra.mxu0 %v534
    %v553 = vpop.f32.mrf.mxu0
    %v554 = vadd.f32 0.0, %v553
    %555 = vdwg.mxu0
    %556 = vrot.lane.b32.xlu0 %v148, 64
    %v557 = vpop.permute.xlu0 %556
    %v560 = vsel %vm157, %v448, 0
    %562 = vmatpush.msra.mxu0 0.0
    %563 = vmatpush.msra.mxu0 0.0
    %564 = vmatpush.msra.mxu0 0.0
    %565 = vmatpush.msra.mxu0 0.0
    %566 = vmatpush.msra.mxu0 0.0
    %567 = vmatpush.msra.mxu0 0.0
    %568 = vmatpush.msra.mxu0 0.0
    %569 = vmatpush.msra.mxu0 0.0
    %570 = vmatpush.msra.mxu0 0.0
    %571 = vmatpush.msra.mxu0 0.0
    %572 = vmatpush.msra.mxu0 0.0
    %573 = vmatpush.msra.mxu0 0.0
    %574 = vmatpush.msra.mxu0 0.0
    %575 = vmatpush.msra.mxu0 0.0
    %576 = vmatpush.msra.mxu0 0.0
    %577 = vmatpush.msra.mxu0 %v557
    %578 = vmatmul.f32.gmra.mxu0 %v560
    %v579 = vpop.f32.mrf.mxu0
    %v580 = vadd.f32 0.0, %v579
    %581 = vdwg.mxu0
    %582 = vrot.lane.b32.xlu0 %v150, 64
    %v583 = vpop.permute.xlu0 %582
    %v586 = vsel %vm157, %v449, 0
    %588 = vmatpush.msra.mxu0 0.0
    %589 = vmatpush.msra.mxu0 0.0
    %590 = vmatpush.msra.mxu0 0.0
    %591 = vmatpush.msra.mxu0 0.0
    %592 = vmatpush.msra.mxu0 0.0
    %593 = vmatpush.msra.mxu0 0.0
    %594 = vmatpush.msra.mxu0 0.0
    %595 = vmatpush.msra.mxu0 0.0
    %596 = vmatpush.msra.mxu0 0.0
    %597 = vmatpush.msra.mxu0 0.0
    %598 = vmatpush.msra.mxu0 0.0
    %599 = vmatpush.msra.mxu0 0.0
    %600 = vmatpush.msra.mxu0 0.0
    %601 = vmatpush.msra.mxu0 0.0
    %602 = vmatpush.msra.mxu0 0.0
    %603 = vmatpush.msra.mxu0 %v583
    %604 = vmatmul.f32.gmra.mxu0 %v586
    %v605 = vpop.f32.mrf.mxu0
    %v606 = vadd.f32 0.0, %v605
    %607 = vdwg.mxu0
    %608 = vrot.lane.b32.xlu0 %v152, 64
    %v609 = vpop.permute.xlu0 %608
    %v612 = vsel %vm157, %v450, 0
    %614 = vmatpush.msra.mxu0 0.0
    %615 = vmatpush.msra.mxu0 0.0
    %616 = vmatpush.msra.mxu0 0.0
    %617 = vmatpush.msra.mxu0 0.0
    %618 = vmatpush.msra.mxu0 0.0
    %619 = vmatpush.msra.mxu0 0.0
    %620 = vmatpush.msra.mxu0 0.0
    %621 = vmatpush.msra.mxu0 0.0
    %622 = vmatpush.msra.mxu0 0.0
    %623 = vmatpush.msra.mxu0 0.0
    %624 = vmatpush.msra.mxu0 0.0
    %625 = vmatpush.msra.mxu0 0.0
    %626 = vmatpush.msra.mxu0 0.0
    %627 = vmatpush.msra.mxu0 0.0
    %628 = vmatpush.msra.mxu0 0.0
    %629 = vmatpush.msra.mxu0 %v609
    %630 = vmatmul.f32.gmra.mxu0 %v612
    %v631 = vpop.f32.mrf.mxu0
    %v632 = vadd.f32 0.0, %v631
    %633 = vdwg.mxu0
    %634 = vrot.lane.b32.xlu0 %v154, 64
    %v635 = vpop.permute.xlu0 %634
    %v638 = vsel %vm157, %v451, 0
    %640 = vmatpush.msra.mxu0 0.0
    %641 = vmatpush.msra.mxu0 0.0
    %642 = vmatpush.msra.mxu0 0.0
    %643 = vmatpush.msra.mxu0 0.0
    %644 = vmatpush.msra.mxu0 0.0
    %645 = vmatpush.msra.mxu0 0.0
    %646 = vmatpush.msra.mxu0 0.0
    %647 = vmatpush.msra.mxu0 0.0
    %648 = vmatpush.msra.mxu0 0.0
    %649 = vmatpush.msra.mxu0 0.0
    %650 = vmatpush.msra.mxu0 0.0
    %651 = vmatpush.msra.mxu0 0.0
    %652 = vmatpush.msra.mxu0 0.0
    %653 = vmatpush.msra.mxu0 0.0
    %654 = vmatpush.msra.mxu0 0.0
    %655 = vmatpush.msra.mxu0 %v635
    %656 = vmatmul.f32.gmra.mxu0 %v638
    %v657 = vpop.f32.mrf.mxu0
    %v658 = vadd.f32 0.0, %v657
    %659 = vdwg.mxu0
    %662 = vrot.lane.b32.xlu0 %v528, 8
    %v663 = vpop.permute.xlu0 %662
    %664 = vrot.lane.b32.xlu0 %v554, 8
    %v665 = vpop.permute.xlu0 %664
    %670 = vrot.lane.b32.xlu0 %v580, 16
    %v671 = vpop.permute.xlu0 %670
    %672 = vrot.lane.b32.xlu0 %v606, 16
    %v673 = vpop.permute.xlu0 %672
    %678 = vrot.lane.b32.xlu0 %v632, 24
    %v679 = vpop.permute.xlu0 %678
    %680 = vrot.lane.b32.xlu0 %v658, 24
    %v681 = vpop.permute.xlu0 %680
    %v684 = vsel %vm157, %v476, %v663
    %v685 = vsel %vm157, %v502, %v665
    %vm686 = vcmask 130048
    %v687 = vsel %vm686, %v684, %v671
    %v688 = vsel %vm686, %v685, %v673
    %vm689 = vcmask 195584
    %v690 = vsel %vm689, %v687, %v679
    %v691 = vsel %vm689, %v688, %v681
    %v692 = vpack.c.bf16 %v691, %v690
    %v693 = vld [vmem:[%s3] sm:$0xf]
    %v694 = vld [vmem:[%s3 + $0x4] sm:$0xf]
    %v695 = vld [vmem:[%s3 + $0x8] sm:$0xf]
    %v696 = vld [vmem:[%s3 + $0xc] sm:$0xf]
    %v697 = vperm.slane %v60, 0
    %v702 = vunpack.c.l.b16 %v693
    %v703 = vunpack.c.l.b16 %v694
    %v704 = vunpack.c.l.b16 %v695
    %v705 = vunpack.c.l.b16 %v696
    %v706 = vpack.c.b16 %v703, %v702
    %v707 = vpack.c.b16 %v705, %v704
    %v711 = vsel %vm63, %v692, 0
    %713 = vmatpush.bf16.msra.mxu0 0
    %714 = vmatpush.bf16.msra.mxu0 0
    %715 = vmatpush.bf16.msra.mxu0 0
    %716 = vmatpush.bf16.msra.mxu0 0
    %717 = vmatpush.bf16.msra.mxu0 0
    %718 = vmatpush.bf16.msra.mxu0 0
    %719 = vmatpush.bf16.msra.mxu0 %v707
    %720 = vmatpush.bf16.msra.mxu0 %v706
    %721 = vmatmul.bf16.gmra.mxu0 %v711
    %v722 = vpop.f32.mrf.mxu0
    %v723 = vadd.f32 %v697, %v722
    %v724 = vpop.f32.mrf.mxu0
    %v725 = vadd.f32 %v697, %v724
    %726 = vdwg.mxu0
    %v727 = vadd.f32 %v55, %v723
    %v728 = vadd.f32 %v56, %v725
    %v729 = vmul.f32 %v727, %v727
    %v730 = vmul.f32 %v728, %v728
    %v731 = vsel %vm63, %v729, 0.0
    %732 = vadd.xlane.f32.xlu0 %v731
    %v733 = vpop.xlane.xlu0 %732
    %v734 = vsel %vm63, %v730, 0.0
    %735 = vadd.xlane.f32.xlu0 %v734
    %v736 = vpop.xlane.xlu0 %735
    %v737 = vmul.f32 %v733, %v76
    %v738 = vmul.f32 %v736, %v76
    %v739 = vadd.f32 %v737, 1e-06
    %v740 = vadd.f32 %v738, 1e-06
    %v741 = vrsqrt.pop %v739
    %v742 = vmul.f32 %v741, %v739
    %v743 = vmul.f32 %v742, %v741
    %v744 = vmul.f32 0.5, %v743
    %v745 = vsub.f32 1.5, %v744
    %v746 = vmul.f32 %v741, %v745
    %vm747 = vweird.f32 %v739
    %vm748 = vweird.f32 %v741
    %vm749 = vmor %vm747, %vm748
    %v750 = vsel %vm749, %v741, %v746
    %v751 = vrsqrt.pop %v740
    %v752 = vmul.f32 %v751, %v740
    %v753 = vmul.f32 %v752, %v751
    %v754 = vmul.f32 0.5, %v753
    %v755 = vsub.f32 1.5, %v754
    %v756 = vmul.f32 %v751, %v755
    %vm757 = vweird.f32 %v740
    %vm758 = vweird.f32 %v751
    %vm759 = vmor %vm757, %vm758
    %v760 = vsel %vm759, %v751, %v756
    %v761 = vmul.f32 %v727, %v750
    %v762 = vmul.f32 %v728, %v760
    %v763 = vperm.slane %v59, 0
    %v764 = vmul.f32 %v761, %v763
    %v765 = vmul.f32 %v762, %v763
    %v766 = vpack.c.bf16 %v765, %v764
    %v767 = vld [vmem:[#allocation5] sm:$0xf]
    %v768 = vld [vmem:[#allocation5 + $0x4] sm:$0xf]
    %v769 = vld [vmem:[#allocation5 + $0x8] sm:$0xf]
    %v770 = vld [vmem:[#allocation5 + $0xc] sm:$0xf]
    %v775 = vunpack.c.l.b16 %v767
    %v776 = vunpack.c.l.b16 %v768
    %v777 = vunpack.c.l.b16 %v769
    %v778 = vunpack.c.l.b16 %v770
    %v779 = vpack.c.b16 %v776, %v775
    %v780 = vpack.c.b16 %v778, %v777
    %v784 = vsel %vm63, %v766, 0
    %786 = vmatpush.bf16.msra.mxu0 0
    %787 = vmatpush.bf16.msra.mxu0 0
    %788 = vmatpush.bf16.msra.mxu0 0
    %789 = vmatpush.bf16.msra.mxu0 0
    %790 = vmatpush.bf16.msra.mxu0 0
    %791 = vmatpush.bf16.msra.mxu0 0
    %792 = vmatpush.bf16.msra.mxu0 %v780
    %793 = vmatpush.bf16.msra.mxu0 %v779
    %794 = vmatmul.bf16.gmra.mxu0 %v784
    %v795 = vpop.f32.mrf.mxu0
    %v796 = vadd.f32 0.0, %v795
    %v797 = vpop.f32.mrf.mxu0
    %v798 = vadd.f32 0.0, %v797
    %799 = vdwg.mxu0
    %v800 = vmul.f32 %v796, 0.5
    %v801 = vmul.f32 %v798, 0.5
    %v802 = vtanh.pop %v800
    %v803 = vtanh.pop %v801
    %v804 = vmul.f32 %v802, 0.5
    %v805 = vmul.f32 %v803, 0.5
    %v806 = vadd.f32 %v804, 0.5
    %v807 = vadd.f32 %v805, 0.5
    %v808 = vmul.f32 %v796, %v806
    %v809 = vmul.f32 %v798, %v807
    %812 = vrot.lane.b32.xlu0 %v796, 64
    %v813 = vpop.permute.xlu0 %812
    %814 = vrot.lane.b32.xlu0 %v798, 64
    %v815 = vpop.permute.xlu0 %814
    %v818 = vmul.f32 %v808, %v813
    %v819 = vmul.f32 %v809, %v815
    %v820 = vpack.c.bf16 %v819, %v818
    %v821 = vld [vmem:[%s5] sm:$0xf]
    %v822 = vld [vmem:[%s5 + $0x4] sm:$0xf]
    %v823 = vld [vmem:[%s5 + $0x8] sm:$0xf]
    %v824 = vld [vmem:[%s5 + $0xc] sm:$0xf]
    %v825 = vld [vmem:[%s5 + $0x10] sm:$0xf]
    %v826 = vld [vmem:[%s5 + $0x14] sm:$0xf]
    %v827 = vld [vmem:[%s5 + $0x18] sm:$0xf]
    %v828 = vld [vmem:[%s5 + $0x1c] sm:$0xf]
    %v837 = vunpack.c.l.b16 %v821
    %v838 = vunpack.c.l.b16 %v822
    %v839 = vunpack.c.l.b16 %v823
    %v840 = vunpack.c.l.b16 %v824
    %v841 = vunpack.c.l.b16 %v825
    %v842 = vunpack.c.l.b16 %v826
    %v843 = vunpack.c.l.b16 %v827
    %v844 = vunpack.c.l.b16 %v828
    %v845 = vpack.c.b16 %v838, %v837
    %v846 = vpack.c.b16 %v840, %v839
    %v847 = vpack.c.b16 %v842, %v841
    %v848 = vpack.c.b16 %v844, %v843
    %vm853 = vcmask 523264
    %v855 = vsel %vm853, %v820, 0
    %857 = vmatpush.bf16.msra.mxu0 0
    %858 = vmatpush.bf16.msra.mxu0 0
    %859 = vmatpush.bf16.msra.mxu0 0
    %860 = vmatpush.bf16.msra.mxu0 0
    %861 = vmatpush.bf16.msra.mxu0 %v848
    %862 = vmatpush.bf16.msra.mxu0 %v847
    %863 = vmatpush.bf16.msra.mxu0 %v846
    %864 = vmatpush.bf16.msra.mxu0 %v845
    %865 = vmatmul.bf16.gmra.mxu0 %v855
    %v866 = vpop.f32.mrf.mxu0
    %v867 = vadd.f32 0.0, %v866
    %v868 = vpop.f32.mrf.mxu0
    %v869 = vadd.f32 0.0, %v868
    %870 = vdwg.mxu0
    %v871 = vadd.f32 %v727, %v867
    %v872 = vadd.f32 %v728, %v869
    %873 = vst.msk [vmem:[#allocation7] sm:$0xff] %vm63, %v871
    %874 = vst.msk [vmem:[#allocation7 + $0x8] sm:$0xff] %vm63, %v872
    // Predicated region
    $region34: #{encoder_layer.1} parent=1 // pred_check
      _
    $region35: #{encoder_layer.1} parent=1 // pred_check_branch
      %876 = sbr.rel (0) target = $region37
    $region36: #{encoder_layer.1} parent=1 // pred_region
      %878 = vsyncadd [#allocation4], 0
      %s879 = sshll.u32 [#allocation7], 4
      %s880 = int_to_ptr.vmem [resolvable:$true] %s879
      %s881 = sshll.u32 %s6, 4
      %s882 = int_to_ptr.hbm [resolvable:$true] %s881
      %887 = dma.vmem_to_hbm [thread:$0]  %s880, 256, %s882, [#allocation4], 128, 128, 8
    $region37: #{encoder_layer.1} parent=1 // pred_fallthru
      _
    // Predicated region
    $region38: #{encoder_layer.1} parent=1 // pred_check
      _
    $region39: #{encoder_layer.1} parent=1 // pred_check_branch
      %889 = sbr.rel (0) target = $region41
    $region40: #{encoder_layer.1} parent=1 // pred_region
      %891 = dma.done [#allocation4], 256
    $region41: #{encoder_layer.1} parent=1 // pred_fallthru
      _
    %892 = vsyncpa [#allocation3], 1
    %893 = vsyncpa [#allocation6], 1
    %894 = vsyncpa [#allocation4], 1

</llo_original>
